<compile_context>
chip_gen: v7x
topology: tpu7x:2x2x1
jax: 0.10.0
libtpu: 0.0.40
codegen_flags: <defaults>
</compile_context>

<pallas_src>
from functools import partial

import jax
import jax.numpy as jnp
from jax.experimental import pallas as pl
from jax.experimental.pallas import tpu as pltpu

_NEG_INF = -1e30   # large finite negative used to mask diagonal / padded columns
_EPS_SQ = 1e-24    # matches F.normalize eps=1e-12: max(||x||, eps) == sqrt(max(ss, eps^2))
_VMEM_LIMIT = 32 * 1024 * 1024  # explicit scoped-VMEM budget, safe on v5e/v6e/v7x


def _round_up(x, m):
    return ((x + m - 1) // m) * m


# ---------------------------------------------------------------------------
# Prologue: normalize rows once; fold 1/temperature into the row-side operand.
# ---------------------------------------------------------------------------
def _prep_kernel(x_ref, xn_ref, xs_ref, *, inv_temp):
    x = x_ref[...]
    ss = jnp.sum(x * x, axis=1, keepdims=True)
    inv_norm = jax.lax.rsqrt(jnp.maximum(ss, _EPS_SQ))   # EUP rsqrt, no sqrt+divide
    xn = x * inv_norm
    xn_ref[...] = xn                  # unit rows (column-side operand)
    xs_ref[...] = xn * inv_temp       # temperature folded in (row-side operand)


# ---------------------------------------------------------------------------
# Main kernel: one (tm, tn) logits tile per grid step, online LSE over columns.
# ---------------------------------------------------------------------------
def _ntxent_lse_kernel(rows_ref, cols_ref, lse_ref, m_sc, l_sc, *, tm, tn, n_valid):
    j = pl.program_id(1)

    @pl.when(j == 0)
    def _init():
        m_sc[...] = jnp.full(m_sc.shape, _NEG_INF, dtype=m_sc.dtype)
        l_sc[...] = jnp.zeros(l_sc.shape, dtype=l_sc.dtype)

    # (tm, D) x (tn, D) contracting on D -> MXU consumes A @ B^T directly.
    s = jax.lax.dot_general(
        rows_ref[...], cols_ref[...],
        dimension_numbers=(((1,), (1,)), ((), ())),
        preferred_element_type=jnp.float32,
    )  # (tm, tn) logits; already scaled by 1/temperature via the row operand.

    # Per-tile masks built from small index vectors (no (n, n) iota arrays).
    r0 = pl.program_id(0) * tm
    c0 = j * tn
    row_ids = r0 + jax.lax.broadcasted_iota(jnp.int32, (tm, 1), 0)
    col_ids = c0 + jax.lax.broadcasted_iota(jnp.int32, (1, tn), 1)
    mask = (row_ids == col_ids) | (col_ids >= n_valid)   # self-sim + padded columns
    s = jnp.where(mask, _NEG_INF, s)

    # Online (flash-style) log-sum-exp accumulation across column tiles.
    m_prev = m_sc[...]
    m_new = jnp.maximum(m_prev, jnp.max(s, axis=1, keepdims=True))
    alpha = jnp.exp(m_prev - m_new)
    l_sc[...] = alpha * l_sc[...] + jnp.sum(jnp.exp(s - m_new), axis=1, keepdims=True)
    m_sc[...] = m_new

    @pl.when(j == pl.num_programs(1) - 1)
    def _finalize():
        lse = m_sc[...] + jnp.log(l_sc[...])
        row_valid = row_ids < n_valid
        lse_ref[...] = jnp.where(row_valid, lse, 0.0)    # padded rows contribute 0


# ---------------------------------------------------------------------------
# Wrapper
# ---------------------------------------------------------------------------
def ntxent_loss(zis, zjs, temperature=0.5):
    assert zis.shape == zjs.shape and zis.ndim == 2
    B, D = zis.shape
    n = 2 * B
    inv_temp = 1.0 / float(temperature)

    # Lane/sublane friendly padding (zeros do not change norms or dot products).
    d_pad = _round_up(D, 128)
    # Power-of-two tiles so n_pad is a multiple of both tm and tn.
    tn = 128 if n <= 128 else (256 if n <= 256 else 512)   # lane-dense column tile
    n_pad = _round_up(n, tn)
    tm = min(256, n_pad)                                    # row tile (divides n_pad)
    # NOTE: the projection dim (D) is kept whole per tile; SimCLR projection
    # dims (<= ~1024) fit comfortably in the 32 MiB VMEM budget.

    reps = jnp.concatenate([zis, zjs], axis=0).astype(jnp.float32)   # concat in wrapper
    reps = jnp.pad(reps, ((0, n_pad - n), (0, d_pad - D)))

    reps_n, reps_s = pl.pallas_call(
        partial(_prep_kernel, inv_temp=inv_temp),
        grid=(n_pad // tm,),
        in_specs=[pl.BlockSpec((tm, d_pad), lambda i: (i, 0))],
        out_specs=[pl.BlockSpec((tm, d_pad), lambda i: (i, 0)),
                   pl.BlockSpec((tm, d_pad), lambda i: (i, 0))],
        out_shape=[jax.ShapeDtypeStruct((n_pad, d_pad), jnp.float32),
                   jax.ShapeDtypeStruct((n_pad, d_pad), jnp.float32)],
        compiler_params=pltpu.CompilerParams(
            dimension_semantics=("parallel",),
            vmem_limit_bytes=_VMEM_LIMIT,
        ),
    )(reps)

    lse = pl.pallas_call(
        partial(_ntxent_lse_kernel, tm=tm, tn=tn, n_valid=n),
        grid=(n_pad // tm, n_pad // tn),
        in_specs=[pl.BlockSpec((tm, d_pad), lambda i, j: (i, 0)),   # row operand (scaled)
                  pl.BlockSpec((tn, d_pad), lambda i, j: (j, 0))],  # column operand
        out_specs=pl.BlockSpec((tm, 1), lambda i, j: (i, 0)),
        out_shape=jax.ShapeDtypeStruct((n_pad, 1), jnp.float32),
        scratch_shapes=[pltpu.VMEM((tm, 1), jnp.float32),   # running max m
                        pltpu.VMEM((tm, 1), jnp.float32)],  # running sum l
        compiler_params=pltpu.CompilerParams(
            dimension_semantics=("parallel", "arbitrary"),  # rows parallel, reduction last
            vmem_limit_bytes=_VMEM_LIMIT,
        ),
    )(reps_s, reps_n)

    # Positive term computed analytically: pos_i = inv_temp * <zis_n[i], zjs_n[i]>,
    # identical for rows i and i+B, so the total over all 2B rows is twice the sum.
    pos_total = 2.0 * inv_temp * jnp.sum(reps_n[:B] * reps_n[B:n])
    return (jnp.sum(lse) - pos_total) / n


# ---------------------------------------------------------------------------
# Pure-JAX reference mirroring the PyTorch module semantics.
# ---------------------------------------------------------------------------
def _ntxent_reference(zis, zjs, temperature=0.5):
    B = zis.shape[0]

    def l2norm(x):
        return x / jnp.maximum(jnp.linalg.norm(x, axis=1, keepdims=True), 1e-12)

    reps = jnp.concatenate([l2norm(zis), l2norm(zjs)], axis=0)
    sim = reps @ reps.T
    n = 2 * B
    logits = sim / temperature
    idx = jnp.arange(n)
    pos = logits[idx, (idx + B) % n]
    masked = jnp.where(jnp.eye(n, dtype=bool), -jnp.inf, logits)
    lse = jax.scipy.special.logsumexp(masked, axis=1)
    return jnp.mean(lse - pos)


if __name__ == "__main__":
    key = jax.random.PRNGKey(0)
    k1, k2, k3, k4 = jax.random.split(key, 4)

    # Small shapes consistent with (batch_size, projection_dim).
    B, D = 4, 32
    zis = jax.random.normal(k1, (B, D), dtype=jnp.float32)
    zjs = jax.random.normal(k2, (B, D), dtype=jnp.float32)
    loss = jax.block_until_ready(ntxent_loss(zis, zjs, temperature=0.5))
    ref = _ntxent_reference(zis, zjs, temperature=0.5)
    assert jnp.allclose(loss, ref, rtol=1e-4, atol=1e-4), (loss, ref)

    # A second case exercising the multi-tile grid path and row/col padding.
    B2, D2 = 300, 96
    zis2 = jax.random.normal(k3, (B2, D2), dtype=jnp.float32)
    zjs2 = jax.random.normal(k4, (B2, D2), dtype=jnp.float32)
    loss2 = jax.block_until_ready(ntxent_loss(zis2, zjs2, temperature=0.2))
    ref2 = _ntxent_reference(zis2, zjs2, temperature=0.2)
    assert jnp.allclose(loss2, ref2, rtol=1e-4, atol=1e-4), (loss2, ref2)

    print("KERNEL_OK")
</pallas_src>

<mosaic_0001>
module attributes {stable_mosaic.version = 11 : i64} {
  func.func @_prep_kernel(%arg0: i32, %arg1: memref<128x128xf32, #tpu.memory_space<vmem>>, %arg2: memref<128x128xf32, #tpu.memory_space<vmem>>, %arg3: memref<128x128xf32, #tpu.memory_space<vmem>>) attributes {dimension_semantics = [#tpu.dimension_semantics<parallel>], iteration_bounds = array<i64: 1>, scalar_prefetch = 0 : i64, scratch_operands = 0 : i64, tpu.core_type = #tpu.core_type<tc>, window_params = [{transform_indices = @transform_0, window_bounds = array<i64: 128, 128>}, {transform_indices = @transform_1, window_bounds = array<i64: 128, 128>}, {transform_indices = @transform_2, window_bounds = array<i64: 128, 128>}]} {
    %c0 = arith.constant 0 : index
    %c0_0 = arith.constant 0 : index
    %0 = vector.load %arg1[%c0, %c0_0] : memref<128x128xf32, #tpu.memory_space<vmem>>, vector<128x128xf32>
    %1 = arith.mulf %0, %0 : vector<128x128xf32>
    %cst = arith.constant dense<0.000000e+00> : vector<128xf32>
    %2 = vector.multi_reduction <add>, %1, %cst [1] : vector<128x128xf32> to vector<128xf32>
    %3 = vector.shape_cast %2 : vector<128xf32> to vector<128x1xf32>
    %cst_1 = arith.constant 1.000000e-24 : f32
    %4 = vector.broadcast %cst_1 : f32 to vector<128x1xf32>
    %5 = arith.maximumf %3, %4 : vector<128x1xf32>
    %6 = math.rsqrt %5 : vector<128x1xf32>
    %7 = vector.broadcast %6 : vector<128x1xf32> to vector<128x128xf32>
    %8 = arith.mulf %0, %7 : vector<128x128xf32>
    %c0_2 = arith.constant 0 : index
    %c0_3 = arith.constant 0 : index
    %9 = vector.load %arg2[%c0_2, %c0_3] : memref<128x128xf32, #tpu.memory_space<vmem>>, vector<128x128xf32>
    tpu.vector_store %arg2[%c0_2, %c0_3], %8 {strides = array<i32>} : memref<128x128xf32, #tpu.memory_space<vmem>>, vector<128x128xf32>,
    %cst_4 = arith.constant 2.000000e+00 : f32
    %10 = vector.broadcast %cst_4 : f32 to vector<128x128xf32>
    %11 = arith.mulf %8, %10 : vector<128x128xf32>
    %c0_5 = arith.constant 0 : index
    %c0_6 = arith.constant 0 : index
    %12 = vector.load %arg3[%c0_5, %c0_6] : memref<128x128xf32, #tpu.memory_space<vmem>>, vector<128x128xf32>
    tpu.vector_store %arg3[%c0_5, %c0_6], %11 {strides = array<i32>} : memref<128x128xf32, #tpu.memory_space<vmem>>, vector<128x128xf32>,
    return
  }
  func.func @transform_0(%arg0: i32) -> (i32, i32) {
    %c0_i32 = arith.constant 0 : i32
    %c0_i32_0 = arith.constant 0 : i32
    return %arg0, %c0_i32 : i32, i32
  }
  func.func @transform_1(%arg0: i32) -> (i32, i32) {
    %c0_i32 = arith.constant 0 : i32
    %c0_i32_0 = arith.constant 0 : i32
    return %arg0, %c0_i32 : i32, i32
  }
  func.func @transform_2(%arg0: i32) -> (i32, i32) {
    %c0_i32 = arith.constant 0 : i32
    %c0_i32_0 = arith.constant 0 : i32
    return %arg0, %c0_i32 : i32, i32
  }
}

</mosaic_0001>

<llo_original>
// kernel: tpu_custom_call.1
$region0: #{tpu_custom_call.1}
  #allocation0 [shape = 'u32[]', space=smem, size = 0x4, offset = 0x4, fixed_abs, tag = 'smem constant byte address 0x4 - core index']
  #allocation1 [shape = 'u32[144,128]{1,0:T(1,128)}', space=vmem, size = 0x12000, scoped, tag = 'internal scratch']
  %s0 = inlined_call_operand.hbm [shape: f32[128,128], index: 0, kind: input, shape index: {}]
  %s1 = inlined_call_operand.hbm [shape: f32[128,128], index: 1, kind: output, shape index: {0}]
  %s2 = inlined_call_operand.hbm [shape: f32[128,128], index: 2, kind: output, shape index: {1}]
  %3 = xla_tuple %s1, %s2
  %s4 = sld [smem:[#allocation0]]
  $region26: #{tpu_custom_call.1} parent=0
    _
  %s6 = ssub.s32 1, %s4
  %s7 = scalar_select 0, %s6, %s4
  $region1: #{tpu_custom_call.1} parent=0
    #allocation2 [shape = 'u8[65536]{0}', space=vmem, size = 0x10000, scoped, tag = 'input window, operand 0, single buffered']
    #allocation3 [shape = 's32[1]{0}', space=sflag, size = 0x4, scoped, tag = 'scoped memory for tpu_custom_call.1']
    #allocation4 [shape = 's32[1]{0}', space=sflag, size = 0x4, scoped, tag = 'scoped memory for tpu_custom_call.1']
    #allocation5 [shape = 'u8[65536]{0}', space=vmem, size = 0x10000, scoped, tag = 'output window, operand 0, single buffered']
    #allocation6 [shape = 'u8[65536]{0}', space=vmem, size = 0x10000, scoped, tag = 'output window, operand 1, single buffered']
    #allocation7 [shape = 's32[1]{0}', space=sflag, size = 0x4, scoped, tag = 'scoped memory for tpu_custom_call.1']
    %8 = vsyncpa [#allocation3], 0
    %9 = vsyncpa [#allocation4], 0
    %10 = vsyncpa [#allocation7], 0
    // Predicated region
    $region2: #{tpu_custom_call.1} parent=1 // pred_check
      _
    $region3: #{tpu_custom_call.1} parent=1 // pred_check_branch
      %12 = sbr.rel (0) target = $region5
    $region4: #{tpu_custom_call.1} parent=1 // pred_region
      %s14 = ssub.s32 2048, 2048
      %15 = vsyncadd [#allocation3], %s14
      %s16 = sshll.u32 [#allocation2], 4
      %s17 = int_to_ptr.vmem [resolvable:$true] %s16
      %22 = dma.hbm_to_vmem [thread:$0]  %s0, 2048, %s17, [#allocation3], 128, 128, 8
    $region5: #{tpu_custom_call.1} parent=1 // pred_fallthru
      _
    // Predicated region
    $region6: #{tpu_custom_call.1} parent=1 // pred_check
      _
    $region7: #{tpu_custom_call.1} parent=1 // pred_check_branch
      %24 = sbr.rel (0) target = $region9
    $region8: #{tpu_custom_call.1} parent=1 // pred_region
      %25 = dma.done [#allocation3], 2048
    $region9: #{tpu_custom_call.1} parent=1 // pred_fallthru
      _
    %v26 = vld [vmem:[#allocation2] sm:$0xff]
    %v27 = vld [vmem:[#allocation2 + $0x8] sm:$0xff]
    %v28 = vld [vmem:[#allocation2 + $0x10] sm:$0xff]
    %v29 = vld [vmem:[#allocation2 + $0x18] sm:$0xff]
    %v30 = vld [vmem:[#allocation2 + $0x20] sm:$0xff]
    %v31 = vld [vmem:[#allocation2 + $0x28] sm:$0xff]
    %v32 = vld [vmem:[#allocation2 + $0x30] sm:$0xff]
    %v33 = vld [vmem:[#allocation2 + $0x38] sm:$0xff]
    %v34 = vld [vmem:[#allocation2 + $0x40] sm:$0xff]
    %v35 = vld [vmem:[#allocation2 + $0x48] sm:$0xff]
    %v36 = vld [vmem:[#allocation2 + $0x50] sm:$0xff]
    %v37 = vld [vmem:[#allocation2 + $0x58] sm:$0xff]
    %v38 = vld [vmem:[#allocation2 + $0x60] sm:$0xff]
    %v39 = vld [vmem:[#allocation2 + $0x68] sm:$0xff]
    %v40 = vld [vmem:[#allocation2 + $0x70] sm:$0xff]
    %v41 = vld [vmem:[#allocation2 + $0x78] sm:$0xff]
    %v42 = vmul.f32 %v26, %v26
    %v43 = vmul.f32 %v27, %v27
    %v44 = vmul.f32 %v28, %v28
    %v45 = vmul.f32 %v29, %v29
    %v46 = vmul.f32 %v30, %v30
    %v47 = vmul.f32 %v31, %v31
    %v48 = vmul.f32 %v32, %v32
    %v49 = vmul.f32 %v33, %v33
    %v50 = vmul.f32 %v34, %v34
    %v51 = vmul.f32 %v35, %v35
    %v52 = vmul.f32 %v36, %v36
    %v53 = vmul.f32 %v37, %v37
    %v54 = vmul.f32 %v38, %v38
    %v55 = vmul.f32 %v39, %v39
    %v56 = vmul.f32 %v40, %v40
    %v57 = vmul.f32 %v41, %v41
    %58 = vadd.xlane.f32.xlu0 %v42
    %v59 = vpop.xlane.xlu0 %58
    %60 = vadd.xlane.f32.xlu0 %v43
    %v61 = vpop.xlane.xlu0 %60
    %62 = vadd.xlane.f32.xlu0 %v44
    %v63 = vpop.xlane.xlu0 %62
    %64 = vadd.xlane.f32.xlu0 %v45
    %v65 = vpop.xlane.xlu0 %64
    %66 = vadd.xlane.f32.xlu0 %v46
    %v67 = vpop.xlane.xlu0 %66
    %68 = vadd.xlane.f32.xlu0 %v47
    %v69 = vpop.xlane.xlu0 %68
    %70 = vadd.xlane.f32.xlu0 %v48
    %v71 = vpop.xlane.xlu0 %70
    %72 = vadd.xlane.f32.xlu0 %v49
    %v73 = vpop.xlane.xlu0 %72
    %74 = vadd.xlane.f32.xlu0 %v50
    %v75 = vpop.xlane.xlu0 %74
    %76 = vadd.xlane.f32.xlu0 %v51
    %v77 = vpop.xlane.xlu0 %76
    %78 = vadd.xlane.f32.xlu0 %v52
    %v79 = vpop.xlane.xlu0 %78
    %80 = vadd.xlane.f32.xlu0 %v53
    %v81 = vpop.xlane.xlu0 %80
    %82 = vadd.xlane.f32.xlu0 %v54
    %v83 = vpop.xlane.xlu0 %82
    %84 = vadd.xlane.f32.xlu0 %v55
    %v85 = vpop.xlane.xlu0 %84
    %86 = vadd.xlane.f32.xlu0 %v56
    %v87 = vpop.xlane.xlu0 %86
    %88 = vadd.xlane.f32.xlu0 %v57
    %v89 = vpop.xlane.xlu0 %88
    %v90 = vmax.f32 %v59, 1e-24
    %v91 = vmax.f32 %v61, 1e-24
    %v92 = vmax.f32 %v63, 1e-24
    %v93 = vmax.f32 %v65, 1e-24
    %v94 = vmax.f32 %v67, 1e-24
    %v95 = vmax.f32 %v69, 1e-24
    %v96 = vmax.f32 %v71, 1e-24
    %v97 = vmax.f32 %v73, 1e-24
    %v98 = vmax.f32 %v75, 1e-24
    %v99 = vmax.f32 %v77, 1e-24
    %v100 = vmax.f32 %v79, 1e-24
    %v101 = vmax.f32 %v81, 1e-24
    %v102 = vmax.f32 %v83, 1e-24
    %v103 = vmax.f32 %v85, 1e-24
    %v104 = vmax.f32 %v87, 1e-24
    %v105 = vmax.f32 %v89, 1e-24
    %v106 = vrsqrt.pop %v90
    %v107 = vrsqrt.pop %v91
    %v108 = vrsqrt.pop %v92
    %v109 = vrsqrt.pop %v93
    %v110 = vrsqrt.pop %v94
    %v111 = vrsqrt.pop %v95
    %v112 = vrsqrt.pop %v96
    %v113 = vrsqrt.pop %v97
    %v114 = vrsqrt.pop %v98
    %v115 = vrsqrt.pop %v99
    %v116 = vrsqrt.pop %v100
    %v117 = vrsqrt.pop %v101
    %v118 = vrsqrt.pop %v102
    %v119 = vrsqrt.pop %v103
    %v120 = vrsqrt.pop %v104
    %v121 = vrsqrt.pop %v105
    %v122 = vmul.f32 %v26, %v106
    %v123 = vmul.f32 %v27, %v107
    %v124 = vmul.f32 %v28, %v108
    %v125 = vmul.f32 %v29, %v109
    %v126 = vmul.f32 %v30, %v110
    %v127 = vmul.f32 %v31, %v111
    %v128 = vmul.f32 %v32, %v112
    %v129 = vmul.f32 %v33, %v113
    %v130 = vmul.f32 %v34, %v114
    %v131 = vmul.f32 %v35, %v115
    %v132 = vmul.f32 %v36, %v116
    %v133 = vmul.f32 %v37, %v117
    %v134 = vmul.f32 %v38, %v118
    %v135 = vmul.f32 %v39, %v119
    %v136 = vmul.f32 %v40, %v120
    %v137 = vmul.f32 %v41, %v121
    %138 = vst [vmem:[#allocation5] sm:$0xff] %v122
    %139 = vst [vmem:[#allocation5 + $0x8] sm:$0xff] %v123
    %140 = vst [vmem:[#allocation5 + $0x10] sm:$0xff] %v124
    %141 = vst [vmem:[#allocation5 + $0x18] sm:$0xff] %v125
    %142 = vst [vmem:[#allocation5 + $0x20] sm:$0xff] %v126
    %143 = vst [vmem:[#allocation5 + $0x28] sm:$0xff] %v127
    %144 = vst [vmem:[#allocation5 + $0x30] sm:$0xff] %v128
    %145 = vst [vmem:[#allocation5 + $0x38] sm:$0xff] %v129
    %146 = vst [vmem:[#allocation5 + $0x40] sm:$0xff] %v130
    %147 = vst [vmem:[#allocation5 + $0x48] sm:$0xff] %v131
    %148 = vst [vmem:[#allocation5 + $0x50] sm:$0xff] %v132
    %149 = vst [vmem:[#allocation5 + $0x58] sm:$0xff] %v133
    %150 = vst [vmem:[#allocation5 + $0x60] sm:$0xff] %v134
    %151 = vst [vmem:[#allocation5 + $0x68] sm:$0xff] %v135
    %152 = vst [vmem:[#allocation5 + $0x70] sm:$0xff] %v136
    %153 = vst [vmem:[#allocation5 + $0x78] sm:$0xff] %v137
    %v154 = vmul.f32 %v122, 2.0
    %v155 = vmul.f32 %v123, 2.0
    %v156 = vmul.f32 %v124, 2.0
    %v157 = vmul.f32 %v125, 2.0
    %v158 = vmul.f32 %v126, 2.0
    %v159 = vmul.f32 %v127, 2.0
    %v160 = vmul.f32 %v128, 2.0
    %v161 = vmul.f32 %v129, 2.0
    %v162 = vmul.f32 %v130, 2.0
    %v163 = vmul.f32 %v131, 2.0
    %v164 = vmul.f32 %v132, 2.0
    %v165 = vmul.f32 %v133, 2.0
    %v166 = vmul.f32 %v134, 2.0
    %v167 = vmul.f32 %v135, 2.0
    %v168 = vmul.f32 %v136, 2.0
    %v169 = vmul.f32 %v137, 2.0
    %170 = vst [vmem:[#allocation6] sm:$0xff] %v154
    %171 = vst [vmem:[#allocation6 + $0x8] sm:$0xff] %v155
    %172 = vst [vmem:[#allocation6 + $0x10] sm:$0xff] %v156
    %173 = vst [vmem:[#allocation6 + $0x18] sm:$0xff] %v157
    %174 = vst [vmem:[#allocation6 + $0x20] sm:$0xff] %v158
    %175 = vst [vmem:[#allocation6 + $0x28] sm:$0xff] %v159
    %176 = vst [vmem:[#allocation6 + $0x30] sm:$0xff] %v160
    %177 = vst [vmem:[#allocation6 + $0x38] sm:$0xff] %v161
    %178 = vst [vmem:[#allocation6 + $0x40] sm:$0xff] %v162
    %179 = vst [vmem:[#allocation6 + $0x48] sm:$0xff] %v163
    %180 = vst [vmem:[#allocation6 + $0x50] sm:$0xff] %v164
    %181 = vst [vmem:[#allocation6 + $0x58] sm:$0xff] %v165
    %182 = vst [vmem:[#allocation6 + $0x60] sm:$0xff] %v166
    %183 = vst [vmem:[#allocation6 + $0x68] sm:$0xff] %v167
    %184 = vst [vmem:[#allocation6 + $0x70] sm:$0xff] %v168
    %185 = vst [vmem:[#allocation6 + $0x78] sm:$0xff] %v169
    // Predicated region
    $region10: #{tpu_custom_call.1} parent=1 // pred_check
      _
    $region11: #{tpu_custom_call.1} parent=1 // pred_check_branch
      %187 = sbr.rel (0) target = $region13
    $region12: #{tpu_custom_call.1} parent=1 // pred_region
      %s189 = ssub.s32 2048, 2048
      %190 = vsyncadd [#allocation4], %s189
      %s191 = sshll.u32 [#allocation5], 4
      %s192 = int_to_ptr.vmem [resolvable:$true] %s191
      %197 = dma.vmem_to_hbm [thread:$0]  %s192, 2048, %s1, [#allocation4], 128, 128, 8
    $region13: #{tpu_custom_call.1} parent=1 // pred_fallthru
      _
    // Predicated region
    $region14: #{tpu_custom_call.1} parent=1 // pred_check
      _
    $region15: #{tpu_custom_call.1} parent=1 // pred_check_branch
      %199 = sbr.rel (0) target = $region17
    $region16: #{tpu_custom_call.1} parent=1 // pred_region
      %s201 = ssub.s32 2048, 2048
      %202 = vsyncadd [#allocation7], %s201
      %s203 = sshll.u32 [#allocation6], 4
      %s204 = int_to_ptr.vmem [resolvable:$true] %s203
      %209 = dma.vmem_to_hbm [thread:$0]  %s204, 2048, %s2, [#allocation7], 128, 128, 8
    $region17: #{tpu_custom_call.1} parent=1 // pred_fallthru
      _
    // Predicated region
    $region18: #{tpu_custom_call.1} parent=1 // pred_check
      _
    $region19: #{tpu_custom_call.1} parent=1 // pred_check_branch
      %211 = sbr.rel (0) target = $region21
    $region20: #{tpu_custom_call.1} parent=1 // pred_region
      %212 = dma.done [#allocation4], 2048
    $region21: #{tpu_custom_call.1} parent=1 // pred_fallthru
      _
    // Predicated region
    $region22: #{tpu_custom_call.1} parent=1 // pred_check
      _
    $region23: #{tpu_custom_call.1} parent=1 // pred_check_branch
      %214 = sbr.rel (0) target = $region25
    $region24: #{tpu_custom_call.1} parent=1 // pred_region
      %215 = dma.done [#allocation7], 2048
    $region25: #{tpu_custom_call.1} parent=1 // pred_fallthru
      _
    %216 = vsyncpa [#allocation3], 1
    %217 = vsyncpa [#allocation4], 1
    %218 = vsyncpa [#allocation7], 1

</llo_original>
